<compile_context>
chip_gen: v5e
topology: v5e:2x2
jax: 0.10.0
libtpu: 0.0.40
codegen_flags: <defaults>
</compile_context>

<pallas_src>
import jax
import jax.numpy as jnp
import numpy as np
from jax import lax
from jax.experimental import pallas as pl
from jax.experimental.pallas import tpu as pltpu


def _round_up(n, m):
    return ((n + m - 1) // m) * m


# ----------------------------- Pallas kernel --------------------------------
def _binary_output_kernel(x_ref, w1_ref, w2_ref, o_ref):
    """Fused MLP head: sigmoid(relu(x @ W1^T) @ w2^T), lane-dense output.

    x_ref : (Bt, D)    input tile (streamed along the batch grid axis)
    w1_ref: (D, Hp)    W1^T, hidden dim zero-padded to Hp, resident in VMEM
    w2_ref: (1, Hp)    w2, zero-padded to Hp, resident in VMEM
    o_ref : (1, Bt)    lane-dense output tile
    """
    x = x_ref[...]
    # First linear (no bias) + ReLU; f32 accumulation on the MXU.
    h = jnp.dot(x, w1_ref[...], preferred_element_type=jnp.float32)      # (Bt, Hp)
    h = jnp.maximum(h, 0.0)
    # Second linear computed transposed so the result (and the sigmoid / store)
    # is lane-dense: (1, Hp) x (Bt, Hp)^T -> (1, Bt).
    logit = lax.dot_general(
        w2_ref[...], h,
        dimension_numbers=(((1,), (1,)), ((), ())),
        preferred_element_type=jnp.float32,
    )
    o_ref[...] = jax.nn.sigmoid(logit).astype(o_ref.dtype)


# ----------------------------- Tiling heuristic ------------------------------
def _choose_block_b(B):
    """Pick the batch tile.  Big tiles amortize per-step overhead and reach the
    HBM roofline; >= 2 grid steps keeps both v7x TensorCores busy."""
    if B < 8:
        return B  # tiny batch: block dim == full array dim (always legal)
    if B <= 256:
        return max(8, _round_up(pl.cdiv(B, 2), 8))
    return min(2048, max(128, _round_up(pl.cdiv(B, 2), 128)))


# ------------------------------- Forward pass --------------------------------
def binary_output_forward(x, w1_t, w2_p, *, block_b=None):
    """x: (..., D) -> (..., 1).  w1_t: (D, Hp) padded W1^T, w2_p: (1, Hp) padded w2."""
    orig_shape = x.shape
    D = orig_shape[-1]
    Hp = w1_t.shape[1]
    x2d = x.reshape(-1, D)
    B = x2d.shape[0]

    if block_b is None:
        block_b = _choose_block_b(B)
    num_blocks = pl.cdiv(B, block_b)

    elem = jnp.dtype(x.dtype).itemsize
    # Double-buffered x/out tiles + (double-buffered) resident weights + margin.
    vmem_est = elem * (2 * block_b * D + 2 * D * Hp + 2 * 8 * Hp + 2 * 8 * block_b)
    vmem_limit = int(min(max(2 * vmem_est + (4 << 20), 16 << 20), 64 << 20))

    cost = pl.CostEstimate(
        flops=int(2 * B * D * Hp + 2 * B * Hp),
        transcendentals=int(B),
        bytes_accessed=int(elem * (B * D + D * Hp + Hp + B)),
    )

    out = pl.pallas_call(
        _binary_output_kernel,
        out_shape=jax.ShapeDtypeStruct((num_blocks, 1, block_b), x.dtype),
        grid_spec=pltpu.PrefetchScalarGridSpec(
            num_scalar_prefetch=0,
            grid=(num_blocks,),
            in_specs=[
                pl.BlockSpec((block_b, D), lambda i: (i, 0)),   # x tile (streamed)
                pl.BlockSpec((D, Hp), lambda i: (0, 0)),        # W1^T (resident)
                pl.BlockSpec((1, Hp), lambda i: (0, 0)),        # w2   (resident)
            ],
            out_specs=pl.BlockSpec((None, 1, block_b), lambda i: (i, 0, 0)),
        ),
        compiler_params=pltpu.CompilerParams(
            dimension_semantics=("parallel",),
            vmem_limit_bytes=vmem_limit,
        ),
        cost_estimate=cost,
    )(x2d, w1_t, w2_p)

    # Drop rows that belonged to the padded tail of the last (partial) block.
    out_flat = out.reshape(num_blocks * block_b)[:B]
    return out_flat.reshape(orig_shape[:-1] + (1,))


# --------------------------- Parameter construction --------------------------
def init_params(key, input_size):
    """Matches nn.Linear default init: U(-1/sqrt(fan_in), 1/sqrt(fan_in)), no bias."""
    hidden = input_size // 2
    k1, k2 = jax.random.split(key)
    b1 = 1.0 / np.sqrt(input_size)
    b2 = 1.0 / np.sqrt(hidden)
    w1 = jax.random.uniform(k1, (hidden, input_size), jnp.float32, -b1, b1)  # (D//2, D)
    w2 = jax.random.uniform(k2, (1, hidden), jnp.float32, -b2, b2)           # (1, D//2)
    return w1, w2


def prepare_weights(w1, w2):
    """One-time (outside the hot path) weight prep.

    Transposes W1 to (D, Hd) and zero-pads the hidden dim up to a multiple of 128
    so h is a full-lane tile.  Zero columns of W1^T give zero h columns (ReLU(0)=0)
    and the matching zero entries of w2 contribute nothing, so results are unchanged.
    """
    Hd, D = w1.shape
    Hp = max(128, _round_up(Hd, 128))
    w1_t = jnp.zeros((D, Hp), w1.dtype).at[:, :Hd].set(jnp.transpose(w1))
    w2_p = jnp.zeros((1, Hp), w2.dtype).at[:, :Hd].set(w2.reshape(1, Hd))
    return w1_t, w2_p


# ------------------------------ Pure-JAX reference ---------------------------
def _ref_forward(x, w1, w2):
    h = jnp.maximum(x @ w1.T, 0.0)
    return jax.nn.sigmoid(h @ w2.T)


# ----------------------------------- Main ------------------------------------
if __name__ == "__main__":
    INPUT_SIZE = 128
    BATCH = 8

    key = jax.random.PRNGKey(0)
    key_x, key_p, key_x2 = jax.random.split(key, 3)
    X = jax.random.normal(key_x, (BATCH, INPUT_SIZE), dtype=jnp.float32)
    w1, w2 = init_params(key_p, INPUT_SIZE)
    w1_t, w2_p = prepare_weights(w1, w2)

    fwd = jax.jit(binary_output_forward)

    # Small-batch check (matches the module's nominal usage).
    out = jax.block_until_ready(fwd(X, w1_t, w2_p))
    assert out.shape == (BATCH, 1), out.shape
    ref = jax.block_until_ready(_ref_forward(X, w1, w2))
    np.testing.assert_allclose(np.asarray(out), np.asarray(ref), atol=1e-5, rtol=1e-5)

    # Multi-block + partial-last-block check (exercises the lane-dense tiled path).
    B2 = 200
    X2 = jax.random.normal(key_x2, (B2, INPUT_SIZE), dtype=jnp.float32)
    out2 = jax.block_until_ready(fwd(X2, w1_t, w2_p))
    assert out2.shape == (B2, 1), out2.shape
    ref2 = jax.block_until_ready(_ref_forward(X2, w1, w2))
    np.testing.assert_allclose(np.asarray(out2), np.asarray(ref2), atol=1e-5, rtol=1e-5)

    print("KERNEL_OK")
</pallas_src>

<mosaic_0001>
module attributes {stable_mosaic.version = 11 : i64} {
  func.func @_binary_output_kernel(%arg0: i32, %arg1: memref<8x128xf32, #tpu.memory_space<vmem>>, %arg2: memref<128x128xf32, #tpu.memory_space<vmem>>, %arg3: memref<1x128xf32, #tpu.memory_space<vmem>>, %arg4: memref<1x1x8xf32, #tpu.memory_space<vmem>>) attributes {dimension_semantics = [#tpu.dimension_semantics<parallel>], iteration_bounds = array<i64: 1>, scalar_prefetch = 0 : i64, scratch_operands = 0 : i64, tpu.core_type = #tpu.core_type<tc>, window_params = [{transform_indices = @transform_0, window_bounds = array<i64: 8, 128>}, {pipeline_mode = #tpu.pipeline_mode<synchronous>, transform_indices = @transform_1, window_bounds = array<i64: 128, 128>}, {pipeline_mode = #tpu.pipeline_mode<synchronous>, transform_indices = @transform_2, window_bounds = array<i64: 1, 128>}, {transform_indices = @transform_3, window_bounds = array<i64: 1, 1, 8>}]} {
    %c0 = arith.constant 0 : index
    %c0_0 = arith.constant 0 : index
    %0 = vector.load %arg1[%c0, %c0_0] : memref<8x128xf32, #tpu.memory_space<vmem>>, vector<8x128xf32>
    %c0_1 = arith.constant 0 : index
    %c0_2 = arith.constant 0 : index
    %1 = vector.load %arg2[%c0_1, %c0_2] : memref<128x128xf32, #tpu.memory_space<vmem>>, vector<128x128xf32>
    %cst = arith.constant dense<0.000000e+00> : vector<8x128xf32>
    %2 = tpu.matmul %0, %1, %cst {dimension_numbers = #tpu.dot_dimension_numbers<[1], [0], [0], [1], [0, 0, 1, 1], [], []>} : vector<8x128xf32>, vector<128x128xf32>, vector<8x128xf32> -> vector<8x128xf32>
    %cst_3 = arith.constant 0.000000e+00 : f32
    %3 = vector.broadcast %cst_3 : f32 to vector<8x128xf32>
    %4 = arith.maximumf %2, %3 : vector<8x128xf32>
    %c0_4 = arith.constant 0 : index
    %c0_5 = arith.constant 0 : index
    %5 = vector.load %arg3[%c0_4, %c0_5] : memref<1x128xf32, #tpu.memory_space<vmem>>, vector<1x128xf32>
    %cst_6 = arith.constant dense<0.000000e+00> : vector<1x8xf32>
    %6 = tpu.matmul %5, %4, %cst_6 {dimension_numbers = #tpu.dot_dimension_numbers<[1], [1], [0], [0], [0, 0, 1, 0], [], []>} : vector<1x128xf32>, vector<8x128xf32>, vector<1x8xf32> -> vector<1x8xf32>
    %7 = arith.negf %6 : vector<1x8xf32>
    %8 = math.exp %7 : vector<1x8xf32>
    %cst_7 = arith.constant 1.000000e+00 : f32
    %9 = vector.broadcast %cst_7 : f32 to vector<1x8xf32>
    %10 = arith.addf %9, %8 : vector<1x8xf32>
    %11 = arith.divf %9, %10 : vector<1x8xf32>
    %c0_8 = arith.constant 0 : index
    %c0_9 = arith.constant 0 : index
    %c0_10 = arith.constant 0 : index
    %12 = vector.load %arg4[%c0_8, %c0_9, %c0_10] : memref<1x1x8xf32, #tpu.memory_space<vmem>>, vector<1x1x8xf32>
    %13 = vector.shape_cast %12 : vector<1x1x8xf32> to vector<1x8xf32>
    %14 = vector.shape_cast %11 : vector<1x8xf32> to vector<1x1x8xf32>
    tpu.vector_store %arg4[%c0_8, %c0_9, %c0_10], %14 {strides = array<i32>} : memref<1x1x8xf32, #tpu.memory_space<vmem>>, vector<1x1x8xf32>,
    return
  }
  func.func @transform_0(%arg0: i32) -> (i32, i32) {
    %c0_i32 = arith.constant 0 : i32
    %c0_i32_0 = arith.constant 0 : i32
    return %arg0, %c0_i32 : i32, i32
  }
  func.func @transform_1(%arg0: i32) -> (i32, i32) {
    %c0_i32 = arith.constant 0 : i32
    %c0_i32_0 = arith.constant 0 : i32
    %c0_i32_1 = arith.constant 0 : i32
    return %c0_i32, %c0_i32_0 : i32, i32
  }
  func.func @transform_2(%arg0: i32) -> (i32, i32) {
    %c0_i32 = arith.constant 0 : i32
    %c0_i32_0 = arith.constant 0 : i32
    %c0_i32_1 = arith.constant 0 : i32
    return %c0_i32, %c0_i32_0 : i32, i32
  }
  func.func @transform_3(%arg0: i32) -> (i32, i32, i32) {
    %c0_i32 = arith.constant 0 : i32
    %c0_i32_0 = arith.constant 0 : i32
    %c0_i32_1 = arith.constant 0 : i32
    return %arg0, %c0_i32, %c0_i32_0 : i32, i32, i32
  }
}

</mosaic_0001>

<llo_original>
// kernel: binary_output_forward.1
$region0: #{binary_output_forward.1}
  #allocation0 [shape = 'u32[]', space=smem, size = 0x4, offset = 0x4, fixed_abs, tag = 'smem constant byte address 0x4 - core index']
  #allocation1 [shape = 'u32[72,128]{1,0:T(1,128)}', space=vmem, size = 0x9000, scoped, tag = 'internal scratch']
  %s0 = inlined_call_operand.hbm [shape: f32[8,128], index: 0, kind: input, shape index: {}]
  %s1 = inlined_call_operand.hbm [shape: f32[128,128], index: 1, kind: input, shape index: {}]
  %s2 = inlined_call_operand.vmem [shape: f32[1,128], index: 2, kind: input, shape index: {}]
  %s3 = inlined_call_operand.hbm [shape: f32[1,1,8], index: 3, kind: output, shape index: {}]
  %s4 = sld [smem:[#allocation0]]
  $region30: #{binary_output_forward.1} parent=0
    _
  %s6 = ssub.s32 1, %s4
  %s7 = scalar_select 0, %s6, %s4
  $region1: #{binary_output_forward.1} parent=0
    #allocation2 [shape = 'u8[4096]{0}', space=vmem, size = 0x1000, scoped, tag = 'input window, operand 0, single buffered']
    #allocation3 [shape = 's32[1]{0}', space=sflag, size = 0x4, scoped, tag = 'scoped memory for binary_output_forward.1']
    #allocation4 [shape = 's32[1]{0}', space=sflag, size = 0x4, scoped, tag = 'scoped memory for binary_output_forward.1']
    #allocation5 [shape = 'u8[65536]{0}', space=vmem, size = 0x10000, scoped, tag = 'input window, operand 1, single buffered']
    #allocation6 [shape = 's32[1]{0}', space=sflag, size = 0x4, scoped, tag = 'scoped memory for binary_output_forward.1']
    #allocation7 [shape = 'u8[512]{0}', space=vmem, size = 0x400, scoped, tag = 'output window, operand 0, single buffered']
    %8 = vsyncpa [#allocation3], 0
    %9 = vsyncpa [#allocation6], 0
    %10 = vsyncpa [#allocation4], 0
    // Predicated region
    $region2: #{binary_output_forward.1} parent=1 // pred_check
      _
    $region3: #{binary_output_forward.1} parent=1 // pred_check_branch
      %12 = sbr.rel (0) target = $region5
    $region4: #{binary_output_forward.1} parent=1 // pred_region
      %14 = vsyncadd [#allocation3], 0
      %s16 = sshll.u32 %s0, 4
      %s17 = int_to_ptr.hbm [resolvable:$true] %s16
      %s18 = sshll.u32 [#allocation2], 4
      %s19 = int_to_ptr.vmem [resolvable:$true] %s18
      %21 = dma.hbm_to_vmem [thread:$0]  %s17, 128, %s19, [#allocation3]
    $region5: #{binary_output_forward.1} parent=1 // pred_fallthru
      _
    // Predicated region
    $region6: #{binary_output_forward.1} parent=1 // pred_check
      _
    $region7: #{binary_output_forward.1} parent=1 // pred_check_branch
      %23 = sbr.rel (0) target = $region9
    $region8: #{binary_output_forward.1} parent=1 // pred_region
      %25 = vsyncadd [#allocation6], 0
      %s26 = sshll.u32 %s1, 4
      %s27 = int_to_ptr.hbm [resolvable:$true] %s26
      %s28 = sshll.u32 [#allocation5], 4
      %s29 = int_to_ptr.vmem [resolvable:$true] %s28
      %34 = dma.hbm_to_vmem [thread:$0]  %s27, 2048, %s29, [#allocation6], 128, 128, 8
    $region9: #{binary_output_forward.1} parent=1 // pred_fallthru
      _
    // Predicated region
    $region10: #{binary_output_forward.1} parent=1 // pred_check
      _
    $region11: #{binary_output_forward.1} parent=1 // pred_check_branch
      %36 = sbr.rel (0) target = $region13
    $region12: #{binary_output_forward.1} parent=1 // pred_region
      _
    $region13: #{binary_output_forward.1} parent=1 // pred_fallthru
      _
    // Predicated region
    $region14: #{binary_output_forward.1} parent=1 // pred_check
      _
    $region15: #{binary_output_forward.1} parent=1 // pred_check_branch
      %38 = sbr.rel (0) target = $region17
    $region16: #{binary_output_forward.1} parent=1 // pred_region
      %40 = dma.done [#allocation3], 128
    $region17: #{binary_output_forward.1} parent=1 // pred_fallthru
      _
    // Predicated region
    $region18: #{binary_output_forward.1} parent=1 // pred_check
      _
    $region19: #{binary_output_forward.1} parent=1 // pred_check_branch
      %42 = sbr.rel (0) target = $region21
    $region20: #{binary_output_forward.1} parent=1 // pred_region
      %44 = dma.done [#allocation6], 2048
    $region21: #{binary_output_forward.1} parent=1 // pred_fallthru
      _
    %v45 = vld [vmem:[#allocation2] sm:$0xff]
    %v46 = vld [vmem:[#allocation5] sm:$0xff]
    %v47 = vld [vmem:[#allocation5 + $0x8] sm:$0xff]
    %v48 = vld [vmem:[#allocation5 + $0x10] sm:$0xff]
    %v49 = vld [vmem:[#allocation5 + $0x18] sm:$0xff]
    %v50 = vld [vmem:[#allocation5 + $0x20] sm:$0xff]
    %v51 = vld [vmem:[#allocation5 + $0x28] sm:$0xff]
    %v52 = vld [vmem:[#allocation5 + $0x30] sm:$0xff]
    %v53 = vld [vmem:[#allocation5 + $0x38] sm:$0xff]
    %v54 = vld [vmem:[#allocation5 + $0x40] sm:$0xff]
    %v55 = vld [vmem:[#allocation5 + $0x48] sm:$0xff]
    %v56 = vld [vmem:[#allocation5 + $0x50] sm:$0xff]
    %v57 = vld [vmem:[#allocation5 + $0x58] sm:$0xff]
    %v58 = vld [vmem:[#allocation5 + $0x60] sm:$0xff]
    %v59 = vld [vmem:[#allocation5 + $0x68] sm:$0xff]
    %v60 = vld [vmem:[#allocation5 + $0x70] sm:$0xff]
    %v61 = vld [vmem:[#allocation5 + $0x78] sm:$0xff]
    %62 = vmatpush.msra.mxu0 %v61
    %63 = vmatpush.msra.mxu0 %v60
    %64 = vmatpush.msra.mxu0 %v59
    %65 = vmatpush.msra.mxu0 %v58
    %66 = vmatpush.msra.mxu0 %v57
    %67 = vmatpush.msra.mxu0 %v56
    %68 = vmatpush.msra.mxu0 %v55
    %69 = vmatpush.msra.mxu0 %v54
    %70 = vmatpush.msra.mxu0 %v53
    %71 = vmatpush.msra.mxu0 %v52
    %72 = vmatpush.msra.mxu0 %v51
    %73 = vmatpush.msra.mxu0 %v50
    %74 = vmatpush.msra.mxu0 %v49
    %75 = vmatpush.msra.mxu0 %v48
    %76 = vmatpush.msra.mxu0 %v47
    %77 = vmatpush.msra.mxu0 %v46
    %78 = vmatmul.f32.gmra.mxu0 %v45
    %v79 = vpop.f32.mrf.mxu0
    %v80 = vadd.f32 0.0, %v79
    %81 = vdwg.mxu0
    %v82 = vmax.f32 %v80, 0.0
    %v83 = vld [vmem:[%s2] sm:$0x1]
    %84 = vmatpush.xpose.msra.mxu0 0.0
    %85 = vmatpush.xpose.msra.mxu0 0.0
    %86 = vmatpush.xpose.msra.mxu0 0.0
    %87 = vmatpush.xpose.msra.mxu0 0.0
    %88 = vmatpush.xpose.msra.mxu0 0.0
    %89 = vmatpush.xpose.msra.mxu0 0.0
    %90 = vmatpush.xpose.msra.mxu0 0.0
    %91 = vmatpush.xpose.msra.mxu0 0.0
    %92 = vmatpush.xpose.msra.mxu0 0.0
    %93 = vmatpush.xpose.msra.mxu0 0.0
    %94 = vmatpush.xpose.msra.mxu0 0.0
    %95 = vmatpush.xpose.msra.mxu0 0.0
    %96 = vmatpush.xpose.msra.mxu0 0.0
    %97 = vmatpush.xpose.msra.mxu0 0.0
    %98 = vmatpush.xpose.msra.mxu0 0.0
    %99 = vmatpush.xpose.msra.mxu0 %v82
    %100 = vmatmul.f32.gmra.mxu0 %v83
    %v101 = vpop.f32.mrf.mxu0
    %v102 = vadd.f32 0.0, %v101
    %103 = vdwg.mxu0
    %v104 = vxor.u32 %v102, 2147483648
    %v105 = vmul.f32 %v104, 1.442695
    %v106 = vpow.pop %v105
    %v107 = vadd.f32 %v106, 1.0
    %v108 = vrcp.pop %v107
    %v109 = vmul.f32 %v107, %v108
    %v110 = vsub.f32 1.0, %v109
    %v111 = vmul.f32 %v108, %v110
    %v112 = vadd.f32 %v108, %v111
    %vm113 = vweird.f32 %v107
    %vm114 = vweird.f32 %v108
    %vm115 = vmor %vm113, %vm114
    %v116 = vsel %vm115, %v108, %v112
    %v117 = vand.u32 2147483647, %v107
    %vm118 = vcmp.eq.f32.partialorder %v117, 8.507059e+37
    %v119 = vand.u32 %v107, 2147483648
    %v120 = vor.u32 1.1754944e-38, %v119
    %v121 = vsel %vm118, %v120, %v116
    %v122 = vmul.f32 1.0, %v121
    %vm123 = vcmask 57344
    %124 = vst.msk [vmem:[#allocation7] sm:$0x1] %vm123, %v122
    // Predicated region
    $region22: #{binary_output_forward.1} parent=1 // pred_check
      _
    $region23: #{binary_output_forward.1} parent=1 // pred_check_branch
      %126 = sbr.rel (0) target = $region25
    $region24: #{binary_output_forward.1} parent=1 // pred_region
      %128 = vsyncadd [#allocation4], 0
      %s130 = sshll.u32 [#allocation7], 4
      %s131 = int_to_ptr.vmem [resolvable:$true] %s130
      %s132 = sshll.u32 %s3, 4
      %s133 = int_to_ptr.hbm [resolvable:$true] %s132
      %135 = dma.vmem_to_hbm [thread:$0]  %s131, 16, %s133, [#allocation4]
    $region25: #{binary_output_forward.1} parent=1 // pred_fallthru
      _
    // Predicated region
    $region26: #{binary_output_forward.1} parent=1 // pred_check
      _
    $region27: #{binary_output_forward.1} parent=1 // pred_check_branch
      %137 = sbr.rel (0) target = $region29
    $region28: #{binary_output_forward.1} parent=1 // pred_region
      %139 = dma.done [#allocation4], 16
    $region29: #{binary_output_forward.1} parent=1 // pred_fallthru
      _
    %140 = vsyncpa [#allocation3], 1
    %141 = vsyncpa [#allocation6], 1
    %142 = vsyncpa [#allocation4], 1

</llo_original>
